<compile_context>
chip_gen: v7x
topology: tpu7x:2x2x1
jax: 0.10.0
libtpu: 0.0.40
codegen_flags: <defaults>
</compile_context>

<pallas_src>
import math

import jax
import jax.numpy as jnp
from jax.experimental import pallas as pl
from jax.experimental.pallas import tpu as pltpu

LANE = 128      # TPU lane width; the 10-wide feature dims are zero-padded to this.
IN_DIM = 784    # 28*28 flattened input features.
OUT_DIM = 10


def _round_up(n, m):
    return ((n + m - 1) // m) * m


def _cdiv(a, b):
    return (a + b - 1) // b


def mlp_kernel(x_ref, w1_ref, wr_ref, b_ref, o_ref):
    """Fused 4-layer MLP on one (tb, 784) batch tile.

    x_ref : (tb, 784)     f32   (cast to bf16 in-kernel for the MXU)
    w1_ref: (784, 128)    bf16  (fc1 weight, out dim zero-padded 10 -> 128)
    wr_ref: (3, 128, 128) bf16  (fc2..fc4 weights, both dims zero-padded)
    b_ref : (4, 128)      f32   (b1..b4, zero-padded)
    o_ref : (tb, 128)     bf16
    """
    b = b_ref[...]

    x = x_ref[...].astype(jnp.bfloat16)          # free VPU cast; keeps HBM read at f32 once
    h = jnp.dot(x, w1_ref[...], preferred_element_type=jnp.float32)
    h = jnp.maximum(h + b[0:1], 0.0)

    h = jnp.dot(h.astype(jnp.bfloat16), wr_ref[0],
                preferred_element_type=jnp.float32)
    h = jnp.maximum(h + b[1:2], 0.0)

    h = jnp.dot(h.astype(jnp.bfloat16), wr_ref[1],
                preferred_element_type=jnp.float32)
    h = jnp.maximum(h + b[2:3], 0.0)

    h = jnp.dot(h.astype(jnp.bfloat16), wr_ref[2],
                preferred_element_type=jnp.float32)
    o_ref[...] = (h + b[3:4]).astype(o_ref.dtype)   # lane-dense bf16 writeback


def mnist_net_forward(x, params, *, batch_tile=2048):
    """x: (B, 1, 28, 28) float32 (NCHW, like the PyTorch module).
    params: w1..w4 stored transposed as (in, out), b1..b4 as (1, out).
    Returns (B, 10) float32 logits."""
    B = x.shape[0]
    x2d = x.reshape(B, -1)                        # torch.flatten(x, 1); stays f32, no copy
    assert x2d.shape[1] == IN_DIM

    # --- pad / pack weights (zero rows & columns are numerically inert) ---
    def pad2d(a, shape):
        return jnp.pad(a, [(0, s - d) for d, s in zip(a.shape, shape)])

    w1 = pad2d(params["w1"], (IN_DIM, LANE)).astype(jnp.bfloat16)
    w_rest = jnp.stack(
        [pad2d(params[f"w{i}"], (LANE, LANE)) for i in (2, 3, 4)]
    ).astype(jnp.bfloat16)
    biases = jnp.stack(
        [jnp.pad(params[f"b{i}"].reshape(-1), (0, LANE - OUT_DIM))
         for i in (1, 2, 3, 4)]
    ).astype(jnp.float32)

    # --- batch tiling: sublane-aligned tile, >=2 grid programs when B allows,
    #     ragged last block (no wrapper-side pad of x) ---
    tb = min(_round_up(batch_tile, 8), max(8, _round_up(_cdiv(B, 2), 8)))
    n_blocks = pl.cdiv(B, tb)

    # Derive the VMEM limit from actual double-buffered tile bytes (+ headroom
    # for in-flight f32 activations), clamped to [16 MiB, 32 MiB] so it stays
    # within v7x's 64 MiB physical VMEM while still covering v5e's 16 MiB
    # default scoped limit for large tiles on v5e/v6e.
    x_tile_bytes = tb * IN_DIM * 4
    o_tile_bytes = tb * LANE * 2
    w_bytes = (IN_DIM * LANE + 3 * LANE * LANE) * 2 + 4 * LANE * 4
    act_bytes = 4 * tb * LANE * 4
    vmem_limit = 2 * (x_tile_bytes + o_tile_bytes) + 2 * w_bytes + act_bytes + (2 << 20)
    vmem_limit = max(16 << 20, min(vmem_limit, 32 << 20))

    out = pl.pallas_call(
        mlp_kernel,
        out_shape=jax.ShapeDtypeStruct((B, LANE), jnp.bfloat16),
        grid_spec=pltpu.PrefetchScalarGridSpec(
            num_scalar_prefetch=0,
            grid=(n_blocks,),
            in_specs=[
                pl.BlockSpec((tb, IN_DIM), lambda i: (i, 0)),        # x tile (f32)
                pl.BlockSpec((IN_DIM, LANE), lambda i: (0, 0)),      # w1
                pl.BlockSpec((3, LANE, LANE), lambda i: (0, 0, 0)),  # w2..w4
                pl.BlockSpec((4, LANE), lambda i: (0, 0)),           # b1..b4
            ],
            out_specs=pl.BlockSpec((tb, LANE), lambda i: (i, 0)),
        ),
        compiler_params=pltpu.CompilerParams(
            dimension_semantics=("parallel",),
            vmem_limit_bytes=vmem_limit,
        ),
    )(x2d, w1, w_rest, biases)

    # Slice back to the real 10 output classes and upcast to f32 logits.
    return out[:, :OUT_DIM].astype(jnp.float32)


def init_params(key):
    """Deterministic init matching nn.Linear's default U(-1/sqrt(fan_in), ...).
    Weights stored transposed as (in_features, out_features)."""
    dims = [(784, 10), (10, 10), (10, 10), (10, 10)]
    params = {}
    for idx, (fan_in, fan_out) in enumerate(dims, start=1):
        key, kw, kb = jax.random.split(key, 3)
        bound = 1.0 / math.sqrt(fan_in)
        params[f"w{idx}"] = jax.random.uniform(
            kw, (fan_in, fan_out), jnp.float32, minval=-bound, maxval=bound)
        params[f"b{idx}"] = jax.random.uniform(
            kb, (1, fan_out), jnp.float32, minval=-bound, maxval=bound)
    return params


def reference_forward(x, params, *, cast=None):
    """Plain-JAX reference mirroring the PyTorch forward.
    If cast is a dtype (e.g. jnp.bfloat16), inputs/weights/intermediates and
    the final output are rounded through that dtype (with f32 accumulation) to
    mirror the kernel math exactly."""
    c = (lambda a: a) if cast is None else (
        lambda a: a.astype(cast).astype(jnp.float32))
    h = c(x.reshape(x.shape[0], -1))
    h = jnp.maximum(jnp.dot(h, c(params["w1"])) + params["b1"], 0.0)
    h = jnp.maximum(jnp.dot(c(h), c(params["w2"])) + params["b2"], 0.0)
    h = jnp.maximum(jnp.dot(c(h), c(params["w3"])) + params["b3"], 0.0)
    out = jnp.dot(c(h), c(params["w4"])) + params["b4"]
    return c(out)   # kernel stores its output as bf16 too


if __name__ == "__main__":
    key = jax.random.PRNGKey(0)
    key, kx = jax.random.split(key)

    # MNIST-shaped input at small batch: (B, 1, 28, 28) NCHW -> 784 features.
    # B=50 exercises both the multi-program grid (2 blocks of tb=32) and the
    # ragged last block (18 valid rows) that replaced the wrapper-side pad.
    B = 50
    x = jax.random.normal(kx, (B, 1, 28, 28), jnp.float32)
    params = init_params(key)

    out = jax.block_until_ready(mnist_net_forward(x, params))
    assert out.shape == (B, OUT_DIM)

    # Tight check against a reference that mirrors the kernel's bf16 rounding,
    # looser check against the pure-f32 reference (bf16 weights/activations).
    ref_bf16 = reference_forward(x, params, cast=jnp.bfloat16)
    ref_f32 = reference_forward(x, params)
    assert jnp.allclose(out, ref_bf16, atol=1e-2, rtol=1e-2), \
        f"max |diff| vs bf16 ref = {float(jnp.max(jnp.abs(out - ref_bf16)))}"
    assert jnp.allclose(out, ref_f32, atol=2e-1, rtol=2e-1), \
        f"max |diff| vs f32 ref = {float(jnp.max(jnp.abs(out - ref_f32)))}"

    print("KERNEL_OK")
</pallas_src>

<mosaic_0001>
module attributes {stable_mosaic.version = 11 : i64} {
  func.func @mlp_kernel(%arg0: i32, %arg1: memref<32x784xf32, #tpu.memory_space<vmem>>, %arg2: memref<784x128xbf16, #tpu.memory_space<vmem>>, %arg3: memref<3x128x128xbf16, #tpu.memory_space<vmem>>, %arg4: memref<4x128xf32, #tpu.memory_space<vmem>>, %arg5: memref<32x128xbf16, #tpu.memory_space<vmem>>) attributes {dimension_semantics = [#tpu.dimension_semantics<parallel>], iteration_bounds = array<i64: 2>, scalar_prefetch = 0 : i64, scratch_operands = 0 : i64, tpu.core_type = #tpu.core_type<tc>, window_params = [{transform_indices = @transform_0, window_bounds = array<i64: 32, 784>}, {pipeline_mode = #tpu.pipeline_mode<synchronous>, transform_indices = @transform_1, window_bounds = array<i64: 784, 128>}, {pipeline_mode = #tpu.pipeline_mode<synchronous>, transform_indices = @transform_2, window_bounds = array<i64: 3, 128, 128>}, {pipeline_mode = #tpu.pipeline_mode<synchronous>, transform_indices = @transform_3, window_bounds = array<i64: 4, 128>}, {transform_indices = @transform_4, window_bounds = array<i64: 32, 128>}]} {
    %c0 = arith.constant 0 : index
    %c0_0 = arith.constant 0 : index
    %0 = vector.load %arg4[%c0, %c0_0] : memref<4x128xf32, #tpu.memory_space<vmem>>, vector<4x128xf32>
    %c0_1 = arith.constant 0 : index
    %c0_2 = arith.constant 0 : index
    %1 = vector.load %arg1[%c0_1, %c0_2] : memref<32x784xf32, #tpu.memory_space<vmem>>, vector<32x784xf32>
    %2 = arith.truncf %1 : vector<32x784xf32> to vector<32x784xbf16>
    %c0_3 = arith.constant 0 : index
    %c0_4 = arith.constant 0 : index
    %3 = vector.load %arg2[%c0_3, %c0_4] : memref<784x128xbf16, #tpu.memory_space<vmem>>, vector<784x128xbf16>
    %cst = arith.constant dense<0.000000e+00> : vector<32x128xf32>
    %4 = tpu.matmul %2, %3, %cst {dimension_numbers = #tpu.dot_dimension_numbers<[1], [0], [0], [1], [0, 0, 1, 1], [], []>} : vector<32x784xbf16>, vector<784x128xbf16>, vector<32x128xf32> -> vector<32x128xf32>
    %5 = vector.extract_strided_slice %0 {offsets = [0, 0], sizes = [1, 128], strides = [1, 1]} : vector<4x128xf32> to vector<1x128xf32>
    %6 = vector.broadcast %5 : vector<1x128xf32> to vector<32x128xf32>
    %7 = arith.addf %4, %6 : vector<32x128xf32>
    %cst_5 = arith.constant 0.000000e+00 : f32
    %8 = vector.broadcast %cst_5 : f32 to vector<32x128xf32>
    %9 = arith.maximumf %7, %8 : vector<32x128xf32>
    %10 = arith.truncf %9 : vector<32x128xf32> to vector<32x128xbf16>
    %c0_6 = arith.constant 0 : index
    %c0_7 = arith.constant 0 : index
    %c0_8 = arith.constant 0 : index
    %11 = vector.load %arg3[%c0_6, %c0_7, %c0_8] : memref<3x128x128xbf16, #tpu.memory_space<vmem>>, vector<1x128x128xbf16>
    %12 = vector.shape_cast %11 : vector<1x128x128xbf16> to vector<128x128xbf16>
    %cst_9 = arith.constant dense<0.000000e+00> : vector<32x128xf32>
    %13 = tpu.matmul %10, %12, %cst_9 {dimension_numbers = #tpu.dot_dimension_numbers<[1], [0], [0], [1], [0, 0, 1, 1], [], []>} : vector<32x128xbf16>, vector<128x128xbf16>, vector<32x128xf32> -> vector<32x128xf32>
    %14 = vector.extract_strided_slice %0 {offsets = [1, 0], sizes = [1, 128], strides = [1, 1]} : vector<4x128xf32> to vector<1x128xf32>
    %15 = vector.broadcast %14 : vector<1x128xf32> to vector<32x128xf32>
    %16 = arith.addf %13, %15 : vector<32x128xf32>
    %cst_10 = arith.constant 0.000000e+00 : f32
    %17 = vector.broadcast %cst_10 : f32 to vector<32x128xf32>
    %18 = arith.maximumf %16, %17 : vector<32x128xf32>
    %19 = arith.truncf %18 : vector<32x128xf32> to vector<32x128xbf16>
    %c1 = arith.constant 1 : index
    %c0_11 = arith.constant 0 : index
    %c0_12 = arith.constant 0 : index
    %20 = vector.load %arg3[%c1, %c0_11, %c0_12] : memref<3x128x128xbf16, #tpu.memory_space<vmem>>, vector<1x128x128xbf16>
    %21 = vector.shape_cast %20 : vector<1x128x128xbf16> to vector<128x128xbf16>
    %cst_13 = arith.constant dense<0.000000e+00> : vector<32x128xf32>
    %22 = tpu.matmul %19, %21, %cst_13 {dimension_numbers = #tpu.dot_dimension_numbers<[1], [0], [0], [1], [0, 0, 1, 1], [], []>} : vector<32x128xbf16>, vector<128x128xbf16>, vector<32x128xf32> -> vector<32x128xf32>
    %23 = vector.extract_strided_slice %0 {offsets = [2, 0], sizes = [1, 128], strides = [1, 1]} : vector<4x128xf32> to vector<1x128xf32>
    %24 = vector.broadcast %23 : vector<1x128xf32> to vector<32x128xf32>
    %25 = arith.addf %22, %24 : vector<32x128xf32>
    %cst_14 = arith.constant 0.000000e+00 : f32
    %26 = vector.broadcast %cst_14 : f32 to vector<32x128xf32>
    %27 = arith.maximumf %25, %26 : vector<32x128xf32>
    %28 = arith.truncf %27 : vector<32x128xf32> to vector<32x128xbf16>
    %c2 = arith.constant 2 : index
    %c0_15 = arith.constant 0 : index
    %c0_16 = arith.constant 0 : index
    %29 = vector.load %arg3[%c2, %c0_15, %c0_16] : memref<3x128x128xbf16, #tpu.memory_space<vmem>>, vector<1x128x128xbf16>
    %30 = vector.shape_cast %29 : vector<1x128x128xbf16> to vector<128x128xbf16>
    %cst_17 = arith.constant dense<0.000000e+00> : vector<32x128xf32>
    %31 = tpu.matmul %28, %30, %cst_17 {dimension_numbers = #tpu.dot_dimension_numbers<[1], [0], [0], [1], [0, 0, 1, 1], [], []>} : vector<32x128xbf16>, vector<128x128xbf16>, vector<32x128xf32> -> vector<32x128xf32>
    %32 = vector.extract_strided_slice %0 {offsets = [3, 0], sizes = [1, 128], strides = [1, 1]} : vector<4x128xf32> to vector<1x128xf32>
    %33 = vector.broadcast %32 : vector<1x128xf32> to vector<32x128xf32>
    %34 = arith.addf %31, %33 : vector<32x128xf32>
    %35 = arith.truncf %34 : vector<32x128xf32> to vector<32x128xbf16>
    %c0_18 = arith.constant 0 : index
    %c0_19 = arith.constant 0 : index
    %36 = vector.load %arg5[%c0_18, %c0_19] : memref<32x128xbf16, #tpu.memory_space<vmem>>, vector<32x128xbf16>
    tpu.vector_store %arg5[%c0_18, %c0_19], %35 {strides = array<i32>} : memref<32x128xbf16, #tpu.memory_space<vmem>>, vector<32x128xbf16>,
    return
  }
  func.func @transform_0(%arg0: i32) -> (i32, i32) {
    %c0_i32 = arith.constant 0 : i32
    %c0_i32_0 = arith.constant 0 : i32
    return %arg0, %c0_i32 : i32, i32
  }
  func.func @transform_1(%arg0: i32) -> (i32, i32) {
    %c0_i32 = arith.constant 0 : i32
    %c0_i32_0 = arith.constant 0 : i32
    %c0_i32_1 = arith.constant 0 : i32
    return %c0_i32, %c0_i32_0 : i32, i32
  }
  func.func @transform_2(%arg0: i32) -> (i32, i32, i32) {
    %c0_i32 = arith.constant 0 : i32
    %c0_i32_0 = arith.constant 0 : i32
    %c0_i32_1 = arith.constant 0 : i32
    %c0_i32_2 = arith.constant 0 : i32
    return %c0_i32, %c0_i32_0, %c0_i32_1 : i32, i32, i32
  }
  func.func @transform_3(%arg0: i32) -> (i32, i32) {
    %c0_i32 = arith.constant 0 : i32
    %c0_i32_0 = arith.constant 0 : i32
    %c0_i32_1 = arith.constant 0 : i32
    return %c0_i32, %c0_i32_0 : i32, i32
  }
  func.func @transform_4(%arg0: i32) -> (i32, i32) {
    %c0_i32 = arith.constant 0 : i32
    %c0_i32_0 = arith.constant 0 : i32
    return %arg0, %c0_i32 : i32, i32
  }
}

</mosaic_0001>

<llo_original>
// kernel: tpu_custom_call.1
$region0: #{tpu_custom_call.1}
  #allocation0 [shape = 'u32[]', space=smem, size = 0x4, offset = 0x4, fixed_abs, tag = 'smem constant byte address 0x4 - core index']
  #allocation1 [shape = 'u32[144,128]{1,0:T(1,128)}', space=vmem, size = 0x12000, scoped, tag = 'internal scratch']
  %s0 = inlined_call_operand.hbm [shape: f32[50,784], index: 0, kind: input, shape index: {}]
  %s1 = inlined_call_operand.hbm [shape: bf16[784,128], index: 1, kind: input, shape index: {}]
  %s2 = inlined_call_operand.hbm [shape: bf16[3,128,128], index: 2, kind: input, shape index: {}]
  %s3 = inlined_call_operand.vmem [shape: f32[4,128], index: 3, kind: input, shape index: {}]
  %s4 = inlined_call_operand.hbm [shape: bf16[50,128], index: 4, kind: output, shape index: {}]
  %s5 = sld [smem:[#allocation0]]
  $region61: #{tpu_custom_call.1} parent=0
    _
  %s7 = ssub.s32 1, %s5
  %s8 = scalar_select 0, %s7, %s5
  $region1: #{tpu_custom_call.1} parent=0
    #allocation2 [shape = 'u8[229376]{0}', space=vmem, size = 0x38000, scoped, tag = 'input window, operand 0']
    #allocation3 [shape = 's32[2]{0}', space=sflag, size = 0x8, scoped, tag = 'scoped memory for tpu_custom_call.1']
    #allocation4 [shape = 's32[2]{0}', space=sflag, size = 0x8, scoped, tag = 'scoped memory for tpu_custom_call.1']
    #allocation5 [shape = 'u8[200704]{0}', space=vmem, size = 0x31000, scoped, tag = 'input window, operand 1, single buffered']
    #allocation6 [shape = 's32[1]{0}', space=sflag, size = 0x4, scoped, tag = 'scoped memory for tpu_custom_call.1']
    #allocation7 [shape = 'u8[98304]{0}', space=vmem, size = 0x18000, scoped, tag = 'input window, operand 2, single buffered']
    #allocation8 [shape = 'u8[16384]{0}', space=vmem, size = 0x4000, scoped, tag = 'output window, operand 0']
    %9 = vsyncpa [#allocation3], 0
    %s10 = scalar_lea.sflag [#allocation3], 1
    %11 = vsyncpa %s10, 0
    %12 = vsyncpa [#allocation6], 0
    %13 = vsyncpa [#allocation4], 0
    %s14 = scalar_lea.sflag [#allocation4], 1
    %15 = vsyncpa %s14, 0
    loop: start=0, step=1, limit=4
    $region2: #{tpu_custom_call.1} parent=1 // loop_pre_header
      _
    $region3: #{tpu_custom_call.1} parent=1 // loop_header
      %s17 = sphi 0, %s21
      %p18 = scmp.ge.s32.totalorder %s17, 4
      %s27 = sphi 0, %s29
      %s30 = sphi 0, %s27
      %s31 = sphi 0, %s30
      %s47 = sphi 0, %s31
      %s51 = sphi 0, %s51
      %s53 = sphi 0, %s51
      %s54 = sphi 0, %s53
      %s68 = sphi 0, %s54
      %s72 = sphi 0, %s72
      %s74 = sphi 0, %s72
      %s75 = sphi 0, %s74
      %s89 = sphi 0, %s75
      %s93 = sphi 0, %s93
      %s95 = sphi 0, %s93
      %s96 = sphi 0, %s95
      %s110 = sphi 0, %s96
      %s116 = sphi 0, %s118
      %s119 = sphi 0, %s116
      %s120 = sphi 0, %s119
      %s136 = sphi 0, %s120
    $region4: #{tpu_custom_call.1} parent=1 // loop_header_branch
      %20 = sbr.rel (%p18) target = $region8
    $region5: #{tpu_custom_call.1} parent=1 // loop_body
      %s22 = ssub.s32 %s17, 1
      %s23 = ssub.s32 %s17, 2
      %s24 = sadd.s32 %s17, 1
      %s25 = ssub.s32 %s17, %s24
      %p26 = scmp.eq.s32.totalorder %s25, 0
      %s28 = sadd.s32 %s27, 1
      %s29 = scalar_select %p26, %s27, %s28
      %p32 = pneg %p26
      %p33 = scmp.eq.s32.totalorder %s17, 1
      %p34 = por %p32, %p33
      %p35 = scmp.ne.s32.totalorder %s27, %s30
      %p36 = scmp.eq.s32.totalorder %s17, 0
      %p37 = por %p35, %p36
      %p38 = scmp.ne.s32.totalorder %s27, %s30
      %p39 = scmp.eq.s32.totalorder %s22, 1
      %p40 = por %p38, %p39
      %p41 = scmp.ne.s32.totalorder %s30, %s31
      %p42 = scmp.eq.s32.totalorder %s22, 0
      %p43 = por %p41, %p42
      %p44 = scmp.ne.s32.totalorder %s30, %s31
      %p45 = scmp.eq.s32.totalorder %s23, 1
      %p46 = por %p44, %p45
      %p48 = scmp.ne.s32.totalorder %s31, %s47
      %p49 = scmp.eq.s32.totalorder %s23, 0
      %p50 = por %p48, %p49
      %s52 = sadd.s32 %s51, 1
      %p55 = scmp.eq.s32.totalorder %s17, 1
      %p56 = scmp.ne.s32.totalorder %s51, %s53
      %p57 = scmp.eq.s32.totalorder %s17, 0
      %p58 = por %p56, %p57
      %p59 = scmp.ne.s32.totalorder %s51, %s53
      %p60 = scmp.eq.s32.totalorder %s22, 1
      %p61 = por %p59, %p60
      %p62 = scmp.ne.s32.totalorder %s53, %s54
      %p63 = scmp.eq.s32.totalorder %s22, 0
      %p64 = por %p62, %p63
      %p65 = scmp.ne.s32.totalorder %s53, %s54
      %p66 = scmp.eq.s32.totalorder %s23, 1
      %p67 = por %p65, %p66
      %p69 = scmp.ne.s32.totalorder %s54, %s68
      %p70 = scmp.eq.s32.totalorder %s23, 0
      %p71 = por %p69, %p70
      %s73 = sadd.s32 %s72, 1
      %p76 = scmp.eq.s32.totalorder %s17, 1
      %p77 = scmp.ne.s32.totalorder %s72, %s74
      %p78 = scmp.eq.s32.totalorder %s17, 0
      %p79 = por %p77, %p78
      %p80 = scmp.ne.s32.totalorder %s72, %s74
      %p81 = scmp.eq.s32.totalorder %s22, 1
      %p82 = por %p80, %p81
      %p83 = scmp.ne.s32.totalorder %s74, %s75
      %p84 = scmp.eq.s32.totalorder %s22, 0
      %p85 = por %p83, %p84
      %p86 = scmp.ne.s32.totalorder %s74, %s75
      %p87 = scmp.eq.s32.totalorder %s23, 1
      %p88 = por %p86, %p87
      %p90 = scmp.ne.s32.totalorder %s75, %s89
      %p91 = scmp.eq.s32.totalorder %s23, 0
      %p92 = por %p90, %p91
      %s94 = sadd.s32 %s93, 1
      %p97 = scmp.eq.s32.totalorder %s17, 1
      %p98 = scmp.ne.s32.totalorder %s93, %s95
      %p99 = scmp.eq.s32.totalorder %s17, 0
      %p100 = por %p98, %p99
      %p101 = scmp.ne.s32.totalorder %s93, %s95
      %p102 = scmp.eq.s32.totalorder %s22, 1
      %p103 = por %p101, %p102
      %p104 = scmp.ne.s32.totalorder %s95, %s96
      %p105 = scmp.eq.s32.totalorder %s22, 0
      %p106 = por %p104, %p105
      %p107 = scmp.ne.s32.totalorder %s95, %s96
      %p108 = scmp.eq.s32.totalorder %s23, 1
      %p109 = por %p107, %p108
      %p111 = scmp.ne.s32.totalorder %s96, %s110
      %p112 = scmp.eq.s32.totalorder %s23, 0
      %p113 = por %p111, %p112
      %s114 = ssub.s32 %s17, %s24
      %p115 = scmp.eq.s32.totalorder %s114, 0
      %s117 = sadd.s32 %s116, 1
      %s118 = scalar_select %p115, %s116, %s117
      %p121 = pneg %p115
      %p122 = scmp.eq.s32.totalorder %s17, 1
      %p123 = por %p121, %p122
      %p124 = scmp.ne.s32.totalorder %s116, %s119
      %p125 = scmp.eq.s32.totalorder %s17, 0
      %p126 = por %p124, %p125
      %p127 = scmp.ne.s32.totalorder %s116, %s119
      %p128 = scmp.eq.s32.totalorder %s22, 1
      %p129 = por %p127, %p128
      %p130 = scmp.ne.s32.totalorder %s119, %s120
      %p131 = scmp.eq.s32.totalorder %s22, 0
      %p132 = por %p130, %p131
      %p133 = scmp.ne.s32.totalorder %s119, %s120
      %p134 = scmp.eq.s32.totalorder %s23, 1
      %p135 = por %p133, %p134
      %p137 = scmp.ne.s32.totalorder %s120, %s136
      %p138 = scmp.eq.s32.totalorder %s23, 0
      %p139 = por %p137, %p138
      %p140 = scmp.le.s32.totalorder 1, %s17
      %p141 = scmp.lt.s32.totalorder %s17, 3
      %p142 = pnand %p140, %p141
      %p143 = pneg %p142
      // Predicated region
      $region9: #{tpu_custom_call.1} parent=5 // pred_check
        _
      $region10: #{tpu_custom_call.1} parent=5 // pred_check_branch
        %145 = sbr.rel (%p142) target = $region12
      $region11: #{tpu_custom_call.1} parent=5 // pred_region
        %s146 = ssub.s32 %s17, 1
        // Predicated region
        $region13: #{tpu_custom_call.1} parent=11 // pred_check
          %p147 = pneg %p64
        $region14: #{tpu_custom_call.1} parent=11 // pred_check_branch
          %149 = sbr.rel (%p147) target = $region16
        $region15: #{tpu_custom_call.1} parent=11 // pred_region
          %s151 = ssub.s32 6272, 6272
          %152 = vsyncadd [#allocation6], %s151
          %s153 = sshll.u32 [#allocation5], 4
          %s154 = int_to_ptr.vmem [resolvable:$true] %s153
          %159 = dma.hbm_to_vmem [thread:$0]  %s1, 6272, %s154, [#allocation6], 64, 64, 4
        $region16: #{tpu_custom_call.1} parent=11 // pred_fallthru
          _
        // Predicated region
        $region17: #{tpu_custom_call.1} parent=11 // pred_check
          %p160 = pneg %p85
        $region18: #{tpu_custom_call.1} parent=11 // pred_check_branch
          %162 = sbr.rel (%p160) target = $region20
        $region19: #{tpu_custom_call.1} parent=11 // pred_region
          %s164 = ssub.s32 3072, 3072
          %165 = vsyncadd [#allocation6], %s164
          %s166 = sshll.u32 [#allocation7], 4
          %s167 = int_to_ptr.vmem [resolvable:$true] %s166
          %172 = dma.hbm_to_vmem [thread:$0]  %s2, 3072, %s167, [#allocation6], 64, 64, 4
        $region20: #{tpu_custom_call.1} parent=11 // pred_fallthru
          _
        // Predicated region
        $region21: #{tpu_custom_call.1} parent=11 // pred_check
          %p173 = pneg %p106
        $region22: #{tpu_custom_call.1} parent=11 // pred_check_branch
          %175 = sbr.rel (%p173) target = $region24
        $region23: #{tpu_custom_call.1} parent=11 // pred_region
          _
        $region24: #{tpu_custom_call.1} parent=11 // pred_fallthru
          _
      $region12: #{tpu_custom_call.1} parent=5 // pred_fallthru
        _
      %p176 = scmp.lt.s32.totalorder %s17, 2
      // Predicated region
      $region25: #{tpu_custom_call.1} parent=5 // pred_check
        %p177 = pneg %p176
      $region26: #{tpu_custom_call.1} parent=5 // pred_check_branch
        %179 = sbr.rel (%p177) target = $region28
      $region27: #{tpu_custom_call.1} parent=5 // pred_region
        // Predicated region
        $region29: #{tpu_custom_call.1} parent=27 // pred_check
          %p180 = pneg %p37
        $region30: #{tpu_custom_call.1} parent=27 // pred_check_branch
          %182 = sbr.rel (%p180) target = $region32
        $region31: #{tpu_custom_call.1} parent=27 // pred_region
          %s183 = sand.u32 %s27, 1
          %s184 = scalar_lea.sflag [#allocation3], %s183
          %s185 = sand.u32 %s27, 1
          %s186 = smul.addr %s185, 224
          %s187 = scalar_lea.vmem [#allocation2], %s186
          %s188 = smul.u32 4, %s17
          %s189 = ssub.s32 7, %s188
          %p190 = scmp.lt.s32.totalorder %s189, 4
          %s191 = scalar_select %p190, %s189, 4
          %s192 = smul.u32 128, %s191
          %s193 = smul.u32 %s192, 7
          %s195 = ssub.s32 3584, %s193
          %196 = vsyncadd %s184, %s195
          %p197 = scmp.ne.s32.totalorder 0, %s193
          %s198 = smul.addr %s188, 7
          %s199 = smul.addr %s198, 128
          %s200 = scalar_lea.hbm %s0, %s199
          %s201 = smul.u32 56, %s191
          %s202 = sshll.u32 %s187, 4
          %s203 = int_to_ptr.vmem [resolvable:$true] %s202
          %s204 = sshll.u32 %s201, 4
          %208 = dma.hbm_to_vmem [thread:$0]  (%p197), %s200, %s204, %s203, %s184, 896, 896, 56
        $region32: #{tpu_custom_call.1} parent=27 // pred_fallthru
          _
      $region28: #{tpu_custom_call.1} parent=5 // pred_fallthru
        _
      %p209 = scmp.le.s32.totalorder 1, %s17
      %p210 = scmp.lt.s32.totalorder %s17, 3
      %p211 = pnand %p209, %p210
      %p212 = pneg %p211
      // Predicated region
      $region33: #{tpu_custom_call.1} parent=5 // pred_check
        _
      $region34: #{tpu_custom_call.1} parent=5 // pred_check_branch
        %214 = sbr.rel (%p211) target = $region36
      $region35: #{tpu_custom_call.1} parent=5 // pred_region
        %s215 = ssub.s32 %s17, 1
        %s216 = sand.u32 %s30, 1
        %s217 = scalar_lea.sflag [#allocation3], %s216
        %s218 = sand.u32 %s30, 1
        %s219 = smul.addr %s218, 224
        %s220 = scalar_lea.vmem [#allocation2], %s219
        // Predicated region
        $region37: #{tpu_custom_call.1} parent=35 // pred_check
          %p221 = pneg %p43
        $region38: #{tpu_custom_call.1} parent=35 // pred_check_branch
          %223 = sbr.rel (%p221) target = $region40
        $region39: #{tpu_custom_call.1} parent=35 // pred_region
          %224 = dma.done %s217, 3584
        $region40: #{tpu_custom_call.1} parent=35 // pred_fallthru
          _
        // Predicated region
        $region41: #{tpu_custom_call.1} parent=35 // pred_check
          %p225 = pneg %p64
        $region42: #{tpu_custom_call.1} parent=35 // pred_check_branch
          %227 = sbr.rel (%p225) target = $region44
        $region43: #{tpu_custom_call.1} parent=35 // pred_region
          %228 = dma.done [#allocation6], 6272
        $region44: #{tpu_custom_call.1} parent=35 // pred_fallthru
          _
        // Predicated region
        $region45: #{tpu_custom_call.1} parent=35 // pred_check
          %p229 = pneg %p85
        $region46: #{tpu_custom_call.1} parent=35 // pred_check_branch
          %231 = sbr.rel (%p229) target = $region48
        $region47: #{tpu_custom_call.1} parent=35 // pred_region
          %232 = dma.done [#allocation6], 3072
        $region48: #{tpu_custom_call.1} parent=35 // pred_fallthru
          _
        %s233 = sand.u32 %s30, 1
        %s234 = scalar_lea.sflag [#allocation3], %s233
        %s235 = sand.u32 %s30, 1
        %s236 = smul.addr %s235, 224
        %s237 = scalar_lea.vmem [#allocation2], %s236
        %p238 = pneg %p43
        %p239 = pneg %p40
        %p240 = pneg %p64
        %p241 = pneg %p61
        %p242 = pneg %p85
        %p243 = pneg %p82
        %p244 = pneg %p106
        %p245 = pneg %p103
        %p246 = pneg %p132
        %p247 = pneg %p129
        %s248 = sand.u32 %s119, 1
        %s249 = scalar_lea.sflag [#allocation4], %s248
        %s250 = sand.u32 %s119, 1
        %s251 = smul.addr %s250, 16
        %s252 = scalar_lea.vmem [#allocation8], %s251
        %s253 = smul.u32 4, %s22
        %s254 = ssub.s32 7, %s253
        %p255 = scmp.lt.s32.totalorder %s254, 4
        %s256 = scalar_select %p255, %s254, 4
        %s257 = smul.u32 128, %s256
        %s258 = smul.u32 %s257, 7
        %s259 = smul.u32 4, %s22
        %s260 = ssub.s32 7, %s259
        %p261 = scmp.lt.s32.totalorder %s260, 4
        %s262 = scalar_select %p261, %s260, 4
        %s263 = smul.u32 64, %s262
        %v265 = vld [vmem:[%s3] sm:$0xf]
        %v266 = vld [vmem:[%s220] sm:$0xff]
        %v267 = vld [vmem:[%s220 + $0x8] sm:$0xff]
        %v268 = vld [vmem:[%s220 + $0x10] sm:$0xff]
        %v269 = vld [vmem:[%s220 + $0x18] sm:$0xff]
        %v270 = vld [vmem:[%s220 + $0x20] sm:$0xff]
        %v271 = vld [vmem:[%s220 + $0x28] sm:$0xff]
        %v272 = vld [vmem:[%s220 + $0x30] sm:$0xff]
        %v273 = vld [vmem:[%s220 + $0x38] sm:$0xff]
        %v274 = vld [vmem:[%s220 + $0x40] sm:$0xff]
        %v275 = vld [vmem:[%s220 + $0x48] sm:$0xff]
        %v276 = vld [vmem:[%s220 + $0x50] sm:$0xff]
        %v277 = vld [vmem:[%s220 + $0x58] sm:$0xff]
        %v278 = vld [vmem:[%s220 + $0x60] sm:$0xff]
        %v279 = vld [vmem:[%s220 + $0x68] sm:$0xff]
        %v280 = vld [vmem:[%s220 + $0x70] sm:$0xff]
        %v281 = vld [vmem:[%s220 + $0x78] sm:$0xff]
        %v282 = vld [vmem:[%s220 + $0x80] sm:$0xff]
        %v283 = vld [vmem:[%s220 + $0x88] sm:$0xff]
        %v284 = vld [vmem:[%s220 + $0x90] sm:$0xff]
        %v285 = vld [vmem:[%s220 + $0x98] sm:$0xff]
        %v286 = vld [vmem:[%s220 + $0xa0] sm:$0xff]
        %v287 = vld [vmem:[%s220 + $0xa8] sm:$0xff]
        %v288 = vld [vmem:[%s220 + $0xb0] sm:$0xff]
        %v289 = vld [vmem:[%s220 + $0xb8] sm:$0xff]
        %v290 = vld [vmem:[%s220 + $0xc0] sm:$0xff]
        %v291 = vld [vmem:[%s220 + $0xc8] sm:$0xff]
        %v292 = vld [vmem:[%s220 + $0xd0] sm:$0xff]
        %v293 = vld [vmem:[%s220 + $0xd8] sm:$0xff]
        %v294 = vpack.c.bf16 %v273, %v266
        %v295 = vpack.c.bf16 %v274, %v267
        %v296 = vpack.c.bf16 %v275, %v268
        %v297 = vpack.c.bf16 %v276, %v269
        %v298 = vpack.c.bf16 %v277, %v270
        %v299 = vpack.c.bf16 %v278, %v271
        %v300 = vpack.c.bf16 %v279, %v272
        %v301 = vpack.c.bf16 %v287, %v280
        %v302 = vpack.c.bf16 %v288, %v281
        %v303 = vpack.c.bf16 %v289, %v282
        %v304 = vpack.c.bf16 %v290, %v283
        %v305 = vpack.c.bf16 %v291, %v284
        %v306 = vpack.c.bf16 %v292, %v285
        %v307 = vpack.c.bf16 %v293, %v286
        %v308 = vld [vmem:[#allocation5] sm:$0xf]
        %v309 = vld [vmem:[#allocation5 + $0x4] sm:$0xf]
        %v310 = vld [vmem:[#allocation5 + $0x8] sm:$0xf]
        %v311 = vld [vmem:[#allocation5 + $0xc] sm:$0xf]
        %v312 = vld [vmem:[#allocation5 + $0x10] sm:$0xf]
        %v313 = vld [vmem:[#allocation5 + $0x14] sm:$0xf]
        %v314 = vld [vmem:[#allocation5 + $0x18] sm:$0xf]
        %v315 = vld [vmem:[#allocation5 + $0x1c] sm:$0xf]
        %v316 = vld [vmem:[#allocation5 + $0x20] sm:$0xf]
        %v317 = vld [vmem:[#allocation5 + $0x24] sm:$0xf]
        %v318 = vld [vmem:[#allocation5 + $0x28] sm:$0xf]
        %v319 = vld [vmem:[#allocation5 + $0x2c] sm:$0xf]
        %v320 = vld [vmem:[#allocation5 + $0x30] sm:$0xf]
        %v321 = vld [vmem:[#allocation5 + $0x34] sm:$0xf]
        %v322 = vld [vmem:[#allocation5 + $0x38] sm:$0xf]
        %v323 = vld [vmem:[#allocation5 + $0x3c] sm:$0xf]
        %v324 = vld [vmem:[#allocation5 + $0x40] sm:$0xf]
        %v325 = vld [vmem:[#allocation5 + $0x44] sm:$0xf]
        %v326 = vld [vmem:[#allocation5 + $0x48] sm:$0xf]
        %v327 = vld [vmem:[#allocation5 + $0x4c] sm:$0xf]
        %v328 = vld [vmem:[#allocation5 + $0x50] sm:$0xf]
        %v329 = vld [vmem:[#allocation5 + $0x54] sm:$0xf]
        %v330 = vld [vmem:[#allocation5 + $0x58] sm:$0xf]
        %v331 = vld [vmem:[#allocation5 + $0x5c] sm:$0xf]
        %v332 = vld [vmem:[#allocation5 + $0x60] sm:$0xf]
        %v333 = vld [vmem:[#allocation5 + $0x64] sm:$0xf]
        %v334 = vld [vmem:[#allocation5 + $0x68] sm:$0xf]
        %v335 = vld [vmem:[#allocation5 + $0x6c] sm:$0xf]
        %v336 = vld [vmem:[#allocation5 + $0x70] sm:$0xf]
        %v337 = vld [vmem:[#allocation5 + $0x74] sm:$0xf]
        %v338 = vld [vmem:[#allocation5 + $0x78] sm:$0xf]
        %v339 = vld [vmem:[#allocation5 + $0x7c] sm:$0xf]
        %v340 = vld [vmem:[#allocation5 + $0x80] sm:$0xf]
        %v341 = vld [vmem:[#allocation5 + $0x84] sm:$0xf]
        %v342 = vld [vmem:[#allocation5 + $0x88] sm:$0xf]
        %v343 = vld [vmem:[#allocation5 + $0x8c] sm:$0xf]
        %v344 = vld [vmem:[#allocation5 + $0x90] sm:$0xf]
        %v345 = vld [vmem:[#allocation5 + $0x94] sm:$0xf]
        %v346 = vld [vmem:[#allocation5 + $0x98] sm:$0xf]
        %v347 = vld [vmem:[#allocation5 + $0x9c] sm:$0xf]
        %v348 = vld [vmem:[#allocation5 + $0xa0] sm:$0xf]
        %v349 = vld [vmem:[#allocation5 + $0xa4] sm:$0xf]
        %v350 = vld [vmem:[#allocation5 + $0xa8] sm:$0xf]
        %v351 = vld [vmem:[#allocation5 + $0xac] sm:$0xf]
        %v352 = vld [vmem:[#allocation5 + $0xb0] sm:$0xf]
        %v353 = vld [vmem:[#allocation5 + $0xb4] sm:$0xf]
        %v354 = vld [vmem:[#allocation5 + $0xb8] sm:$0xf]
        %v355 = vld [vmem:[#allocation5 + $0xbc] sm:$0xf]
        %v356 = vld [vmem:[#allocation5 + $0xc0] sm:$0xf]
        %v357 = vld [vmem:[#allocation5 + $0xc4] sm:$0xf]
        %v358 = vld [vmem:[#allocation5 + $0xc8] sm:$0xf]
        %v359 = vld [vmem:[#allocation5 + $0xcc] sm:$0xf]
        %v360 = vld [vmem:[#allocation5 + $0xd0] sm:$0xf]
        %v361 = vld [vmem:[#allocation5 + $0xd4] sm:$0xf]
        %v362 = vld [vmem:[#allocation5 + $0xd8] sm:$0xf]
        %v363 = vld [vmem:[#allocation5 + $0xdc] sm:$0xf]
        %v364 = vld [vmem:[#allocation5 + $0xe0] sm:$0xf]
        %v365 = vld [vmem:[#allocation5 + $0xe4] sm:$0xf]
        %v366 = vld [vmem:[#allocation5 + $0xe8] sm:$0xf]
        %v367 = vld [vmem:[#allocation5 + $0xec] sm:$0xf]
        %v368 = vld [vmem:[#allocation5 + $0xf0] sm:$0xf]
        %v369 = vld [vmem:[#allocation5 + $0xf4] sm:$0xf]
        %v370 = vld [vmem:[#allocation5 + $0xf8] sm:$0xf]
        %v371 = vld [vmem:[#allocation5 + $0xfc] sm:$0xf]
        %v372 = vld [vmem:[#allocation5 + $0x100] sm:$0xf]
        %v373 = vld [vmem:[#allocation5 + $0x104] sm:$0xf]
        %v374 = vld [vmem:[#allocation5 + $0x108] sm:$0xf]
        %v375 = vld [vmem:[#allocation5 + $0x10c] sm:$0xf]
        %v376 = vld [vmem:[#allocation5 + $0x110] sm:$0xf]
        %v377 = vld [vmem:[#allocation5 + $0x114] sm:$0xf]
        %v378 = vld [vmem:[#allocation5 + $0x118] sm:$0xf]
        %v379 = vld [vmem:[#allocation5 + $0x11c] sm:$0xf]
        %v380 = vld [vmem:[#allocation5 + $0x120] sm:$0xf]
        %v381 = vld [vmem:[#allocation5 + $0x124] sm:$0xf]
        %v382 = vld [vmem:[#allocation5 + $0x128] sm:$0xf]
        %v383 = vld [vmem:[#allocation5 + $0x12c] sm:$0xf]
        %v384 = vld [vmem:[#allocation5 + $0x130] sm:$0xf]
        %v385 = vld [vmem:[#allocation5 + $0x134] sm:$0xf]
        %v386 = vld [vmem:[#allocation5 + $0x138] sm:$0xf]
        %v387 = vld [vmem:[#allocation5 + $0x13c] sm:$0xf]
        %v388 = vld [vmem:[#allocation5 + $0x140] sm:$0xf]
        %v389 = vld [vmem:[#allocation5 + $0x144] sm:$0xf]
        %v390 = vld [vmem:[#allocation5 + $0x148] sm:$0xf]
        %v391 = vld [vmem:[#allocation5 + $0x14c] sm:$0xf]
        %v392 = vld [vmem:[#allocation5 + $0x150] sm:$0xf]
        %v393 = vld [vmem:[#allocation5 + $0x154] sm:$0xf]
        %v394 = vld [vmem:[#allocation5 + $0x158] sm:$0xf]
        %v395 = vld [vmem:[#allocation5 + $0x15c] sm:$0xf]
        %v396 = vld [vmem:[#allocation5 + $0x160] sm:$0xf]
        %v397 = vld [vmem:[#allocation5 + $0x164] sm:$0xf]
        %v398 = vld [vmem:[#allocation5 + $0x168] sm:$0xf]
        %v399 = vld [vmem:[#allocation5 + $0x16c] sm:$0xf]
        %v400 = vld [vmem:[#allocation5 + $0x170] sm:$0xf]
        %v401 = vld [vmem:[#allocation5 + $0x174] sm:$0xf]
        %v402 = vld [vmem:[#allocation5 + $0x178] sm:$0xf]
        %v403 = vld [vmem:[#allocation5 + $0x17c] sm:$0xf]
        %v404 = vld [vmem:[#allocation5 + $0x180] sm:$0xf]
        %v405 = vld [vmem:[#allocation5 + $0x184] sm:$0xf]
        %v406 = vlaneseq
        %v407 = vshrl.u32 %v406, 7
        %v408 = vsub.s32 0, %v407
        %v409 = vrot.slane %v265, %v408
        %v508 = vunpack.c.l.b16 %v308
        %v509 = vunpack.c.l.b16 %v309
        %v510 = vunpack.c.l.b16 %v310
        %v511 = vunpack.c.l.b16 %v311
        %v512 = vunpack.c.l.b16 %v312
        %v513 = vunpack.c.l.b16 %v313
        %v514 = vunpack.c.l.b16 %v314
        %v515 = vunpack.c.l.b16 %v315
        %v516 = vunpack.c.l.b16 %v316
        %v517 = vunpack.c.l.b16 %v317
        %v518 = vunpack.c.l.b16 %v318
        %v519 = vunpack.c.l.b16 %v319
        %v520 = vunpack.c.l.b16 %v320
        %v521 = vunpack.c.l.b16 %v321
        %v522 = vunpack.c.l.b16 %v322
        %v523 = vunpack.c.l.b16 %v323
        %v524 = vunpack.c.l.b16 %v324
        %v525 = vunpack.c.l.b16 %v325
        %v526 = vunpack.c.l.b16 %v326
        %v527 = vunpack.c.l.b16 %v327
        %v528 = vunpack.c.l.b16 %v328
        %v529 = vunpack.c.l.b16 %v329
        %v530 = vunpack.c.l.b16 %v330
        %v531 = vunpack.c.l.b16 %v331
        %v532 = vunpack.c.l.b16 %v332
        %v533 = vunpack.c.l.b16 %v333
        %v534 = vunpack.c.l.b16 %v334
        %v535 = vunpack.c.l.b16 %v335
        %v536 = vunpack.c.l.b16 %v336
        %v537 = vunpack.c.l.b16 %v337
        %v538 = vunpack.c.l.b16 %v338
        %v539 = vunpack.c.l.b16 %v339
        %v540 = vunpack.c.l.b16 %v340
        %v541 = vunpack.c.l.b16 %v341
        %v542 = vunpack.c.l.b16 %v342
        %v543 = vunpack.c.l.b16 %v343
        %v544 = vunpack.c.l.b16 %v344
        %v545 = vunpack.c.l.b16 %v345
        %v546 = vunpack.c.l.b16 %v346
        %v547 = vunpack.c.l.b16 %v347
        %v548 = vunpack.c.l.b16 %v348
        %v549 = vunpack.c.l.b16 %v349
        %v550 = vunpack.c.l.b16 %v350
        %v551 = vunpack.c.l.b16 %v351
        %v552 = vunpack.c.l.b16 %v352
        %v553 = vunpack.c.l.b16 %v353
        %v554 = vunpack.c.l.b16 %v354
        %v555 = vunpack.c.l.b16 %v355
        %v556 = vunpack.c.l.b16 %v356
        %v557 = vunpack.c.l.b16 %v357
        %v558 = vunpack.c.l.b16 %v358
        %v559 = vunpack.c.l.b16 %v359
        %v560 = vunpack.c.l.b16 %v360
        %v561 = vunpack.c.l.b16 %v361
        %v562 = vunpack.c.l.b16 %v362
        %v563 = vunpack.c.l.b16 %v363
        %v564 = vunpack.c.l.b16 %v364
        %v565 = vunpack.c.l.b16 %v365
        %v566 = vunpack.c.l.b16 %v366
        %v567 = vunpack.c.l.b16 %v367
        %v568 = vunpack.c.l.b16 %v368
        %v569 = vunpack.c.l.b16 %v369
        %v570 = vunpack.c.l.b16 %v370
        %v571 = vunpack.c.l.b16 %v371
        %v572 = vunpack.c.l.b16 %v372
        %v573 = vunpack.c.l.b16 %v373
        %v574 = vunpack.c.l.b16 %v374
        %v575 = vunpack.c.l.b16 %v375
        %v576 = vunpack.c.l.b16 %v376
        %v577 = vunpack.c.l.b16 %v377
        %v578 = vunpack.c.l.b16 %v378
        %v579 = vunpack.c.l.b16 %v379
        %v580 = vunpack.c.l.b16 %v380
        %v581 = vunpack.c.l.b16 %v381
        %v582 = vunpack.c.l.b16 %v382
        %v583 = vunpack.c.l.b16 %v383
        %v584 = vunpack.c.l.b16 %v384
        %v585 = vunpack.c.l.b16 %v385
        %v586 = vunpack.c.l.b16 %v386
        %v587 = vunpack.c.l.b16 %v387
        %v588 = vunpack.c.l.b16 %v388
        %v589 = vunpack.c.l.b16 %v389
        %v590 = vunpack.c.l.b16 %v390
        %v591 = vunpack.c.l.b16 %v391
        %v592 = vunpack.c.l.b16 %v392
        %v593 = vunpack.c.l.b16 %v393
        %v594 = vunpack.c.l.b16 %v394
        %v595 = vunpack.c.l.b16 %v395
        %v596 = vunpack.c.l.b16 %v396
        %v597 = vunpack.c.l.b16 %v397
        %v598 = vunpack.c.l.b16 %v398
        %v599 = vunpack.c.l.b16 %v399
        %v600 = vunpack.c.l.b16 %v400
        %v601 = vunpack.c.l.b16 %v401
        %v602 = vunpack.c.l.b16 %v402
        %v603 = vunpack.c.l.b16 %v403
        %v604 = vunpack.c.l.b16 %v404
        %v605 = vunpack.c.l.b16 %v405
        %v606 = vpack.c.b16 %v509, %v508
        %v607 = vpack.c.b16 %v511, %v510
        %v608 = vpack.c.b16 %v513, %v512
        %v609 = vpack.c.b16 %v515, %v514
        %v610 = vpack.c.b16 %v517, %v516
        %v611 = vpack.c.b16 %v519, %v518
        %v612 = vpack.c.b16 %v521, %v520
        %v613 = vpack.c.b16 %v523, %v522
        %v614 = vpack.c.b16 %v525, %v524
        %v615 = vpack.c.b16 %v527, %v526
        %v616 = vpack.c.b16 %v529, %v528
        %v617 = vpack.c.b16 %v531, %v530
        %v618 = vpack.c.b16 %v533, %v532
        %v619 = vpack.c.b16 %v535, %v534
        %v620 = vpack.c.b16 %v537, %v536
        %v621 = vpack.c.b16 %v539, %v538
        %v622 = vpack.c.b16 %v541, %v540
        %v623 = vpack.c.b16 %v543, %v542
        %v624 = vpack.c.b16 %v545, %v544
        %v625 = vpack.c.b16 %v547, %v546
        %v626 = vpack.c.b16 %v549, %v548
        %v627 = vpack.c.b16 %v551, %v550
        %v628 = vpack.c.b16 %v553, %v552
        %v629 = vpack.c.b16 %v555, %v554
        %v630 = vpack.c.b16 %v557, %v556
        %v631 = vpack.c.b16 %v559, %v558
        %v632 = vpack.c.b16 %v561, %v560
        %v633 = vpack.c.b16 %v563, %v562
        %v634 = vpack.c.b16 %v565, %v564
        %v635 = vpack.c.b16 %v567, %v566
        %v636 = vpack.c.b16 %v569, %v568
        %v637 = vpack.c.b16 %v571, %v570
        %v638 = vpack.c.b16 %v573, %v572
        %v639 = vpack.c.b16 %v575, %v574
        %v640 = vpack.c.b16 %v577, %v576
        %v641 = vpack.c.b16 %v579, %v578
        %v642 = vpack.c.b16 %v581, %v580
        %v643 = vpack.c.b16 %v583, %v582
        %v644 = vpack.c.b16 %v585, %v584
        %v645 = vpack.c.b16 %v587, %v586
        %v646 = vpack.c.b16 %v589, %v588
        %v647 = vpack.c.b16 %v591, %v590
        %v648 = vpack.c.b16 %v593, %v592
        %v649 = vpack.c.b16 %v595, %v594
        %v650 = vpack.c.b16 %v597, %v596
        %v651 = vpack.c.b16 %v599, %v598
        %v652 = vpack.c.b16 %v601, %v600
        %v653 = vpack.c.b16 %v603, %v602
        %v654 = vpack.c.b16 %v605, %v604
        %vm704 = vcmask 130048
        %v706 = vsel %vm704, %v300, 0
        %v709 = vsel %vm704, %v307, 0
        %711 = vmatprep.subr.bf16.mxu0 0
        %712 = vmatpush1.bf16.msra.mxu0 %v606
        %713 = vmatprep.subr.bf16.mxu0 0
        %714 = vmatpush1.bf16.msra.mxu0 %v607
        %715 = vmatprep.subr.bf16.mxu0 0
        %716 = vmatpush1.bf16.msra.mxu0 %v608
        %717 = vmatprep.subr.bf16.mxu0 0
        %718 = vmatpush1.bf16.msra.mxu0 %v609
        %719 = vmatprep.subr.bf16.mxu0 0
        %720 = vmatpush1.bf16.msra.mxu0 %v610
        %721 = vmatprep.subr.bf16.mxu0 0
        %722 = vmatpush1.bf16.msra.mxu0 %v611
        %723 = vmatprep.subr.bf16.mxu0 0
        %724 = vmatpush1.bf16.msra.mxu0 %v612
        %725 = vmatprep.subr.bf16.mxu0 0
        %726 = vmatpush1.bf16.msra.mxu0 %v613
        %727 = vmatprep.subr.bf16.mxu0 0
        %728 = vmatpush1.bf16.msra.mxu0 %v614
        %729 = vmatprep.subr.bf16.mxu0 0
        %730 = vmatpush1.bf16.msra.mxu0 %v615
        %731 = vmatprep.subr.bf16.mxu0 0
        %732 = vmatpush1.bf16.msra.mxu0 %v616
        %733 = vmatprep.subr.bf16.mxu0 0
        %734 = vmatpush1.bf16.msra.mxu0 %v617
        %735 = vmatprep.subr.bf16.mxu0 0
        %736 = vmatpush1.bf16.msra.mxu0 %v618
        %737 = vmatprep.subr.bf16.mxu0 0
        %738 = vmatpush1.bf16.msra.mxu0 %v619
        %739 = vmatprep.subr.bf16.mxu0 0
        %740 = vmatpush1.bf16.msra.mxu0 %v620
        %741 = vmatprep.subr.bf16.mxu0 0
        %742 = vmatpush1.bf16.msra.mxu0 %v621
        %743 = vmatprep.mubr.bf16.mxu0 %v295
        %744 = vmatmul.mubr.bf16.gmra.mrb[0].mxu0 %v294
        %v745 = vpop.f32.mrb[0].mxu0
        %v746 = vadd.f32 %v409, %v745
        %v747 = vpop.f32.mrb[0].mxu0
        %v748 = vpop.f32.mrb[0].mxu0
        %v749 = vadd.f32 %v409, %v748
        %v750 = vpop.f32.mrb[0].mxu0
        %751 = vmatprep.mubr.bf16.mxu0 %v302
        %752 = vmatmul.mubr.bf16.gmra.mrb[0].mxu0 %v301
        %v753 = vpop.f32.mrb[0].mxu0
        %v754 = vadd.f32 %v409, %v753
        %v755 = vpop.f32.mrb[0].mxu0
        %v756 = vpop.f32.mrb[0].mxu0
        %v757 = vadd.f32 %v409, %v756
        %v758 = vpop.f32.mrb[0].mxu0
        %759 = vdwg.mxu0
        %760 = vmatprep.subr.bf16.mxu0 0
        %761 = vmatpush1.bf16.msra.mxu0 %v622
        %762 = vmatprep.subr.bf16.mxu0 0
        %763 = vmatpush1.bf16.msra.mxu0 %v623
        %764 = vmatprep.subr.bf16.mxu0 0
        %765 = vmatpush1.bf16.msra.mxu0 %v624
        %766 = vmatprep.subr.bf16.mxu0 0
        %767 = vmatpush1.bf16.msra.mxu0 %v625
        %768 = vmatprep.subr.bf16.mxu0 0
        %769 = vmatpush1.bf16.msra.mxu0 %v626
        %770 = vmatprep.subr.bf16.mxu0 0
        %771 = vmatpush1.bf16.msra.mxu0 %v627
        %772 = vmatprep.subr.bf16.mxu0 0
        %773 = vmatpush1.bf16.msra.mxu0 %v628
        %774 = vmatprep.subr.bf16.mxu0 0
        %775 = vmatpush1.bf16.msra.mxu0 %v629
        %776 = vmatprep.subr.bf16.mxu0 0
        %777 = vmatpush1.bf16.msra.mxu0 %v630
        %778 = vmatprep.subr.bf16.mxu0 0
        %779 = vmatpush1.bf16.msra.mxu0 %v631
        %780 = vmatprep.subr.bf16.mxu0 0
        %781 = vmatpush1.bf16.msra.mxu0 %v632
        %782 = vmatprep.subr.bf16.mxu0 0
        %783 = vmatpush1.bf16.msra.mxu0 %v633
        %784 = vmatprep.subr.bf16.mxu0 0
        %785 = vmatpush1.bf16.msra.mxu0 %v634
        %786 = vmatprep.subr.bf16.mxu0 0
        %787 = vmatpush1.bf16.msra.mxu0 %v635
        %788 = vmatprep.subr.bf16.mxu0 0
        %789 = vmatpush1.bf16.msra.mxu0 %v636
        %790 = vmatprep.subr.bf16.mxu0 0
        %791 = vmatpush1.bf16.msra.mxu0 %v637
        %792 = vmatprep.mubr.bf16.mxu0 %v297
        %793 = vmatmul.mubr.bf16.gmra.mrb[0].mxu0 %v296
        %v794 = vpop.f32.mrb[0].mxu0
        %v795 = vadd.f32 %v746, %v794
        %v796 = vpop.f32.mrb[0].mxu0
        %v797 = vpop.f32.mrb[0].mxu0
        %v798 = vadd.f32 %v749, %v797
        %v799 = vpop.f32.mrb[0].mxu0
        %800 = vmatprep.mubr.bf16.mxu0 %v304
        %801 = vmatmul.mubr.bf16.gmra.mrb[0].mxu0 %v303
        %v802 = vpop.f32.mrb[0].mxu0
        %v803 = vadd.f32 %v754, %v802
        %v804 = vpop.f32.mrb[0].mxu0
        %v805 = vpop.f32.mrb[0].mxu0
        %v806 = vadd.f32 %v757, %v805
        %v807 = vpop.f32.mrb[0].mxu0
        %808 = vdwg.mxu0
        %809 = vmatprep.subr.bf16.mxu0 0
        %810 = vmatpush1.bf16.msra.mxu0 %v638
        %811 = vmatprep.subr.bf16.mxu0 0
        %812 = vmatpush1.bf16.msra.mxu0 %v639
        %813 = vmatprep.subr.bf16.mxu0 0
        %814 = vmatpush1.bf16.msra.mxu0 %v640
        %815 = vmatprep.subr.bf16.mxu0 0
        %816 = vmatpush1.bf16.msra.mxu0 %v641
        %817 = vmatprep.subr.bf16.mxu0 0
        %818 = vmatpush1.bf16.msra.mxu0 %v642
        %819 = vmatprep.subr.bf16.mxu0 0
        %820 = vmatpush1.bf16.msra.mxu0 %v643
        %821 = vmatprep.subr.bf16.mxu0 0
        %822 = vmatpush1.bf16.msra.mxu0 %v644
        %823 = vmatprep.subr.bf16.mxu0 0
        %824 = vmatpush1.bf16.msra.mxu0 %v645
        %825 = vmatprep.subr.bf16.mxu0 0
        %826 = vmatpush1.bf16.msra.mxu0 %v646
        %827 = vmatprep.subr.bf16.mxu0 0
        %828 = vmatpush1.bf16.msra.mxu0 %v647
        %829 = vmatprep.subr.bf16.mxu0 0
        %830 = vmatpush1.bf16.msra.mxu0 %v648
        %831 = vmatprep.subr.bf16.mxu0 0
        %832 = vmatpush1.bf16.msra.mxu0 %v649
        %833 = vmatprep.subr.bf16.mxu0 0
        %834 = vmatpush1.bf16.msra.mxu0 %v650
        %835 = vmatprep.subr.bf16.mxu0 0
        %836 = vmatpush1.bf16.msra.mxu0 %v651
        %837 = vmatprep.subr.bf16.mxu0 0
        %838 = vmatpush1.bf16.msra.mxu0 %v652
        %839 = vmatprep.subr.bf16.mxu0 0
        %840 = vmatpush1.bf16.msra.mxu0 %v653
        %841 = vmatprep.mubr.bf16.mxu0 %v299
        %842 = vmatmul.mubr.bf16.gmra.mrb[0].mxu0 %v298
        %v843 = vpop.f32.mrb[0].mxu0
        %v844 = vadd.f32 %v795, %v843
        %v845 = vpop.f32.mrb[0].mxu0
        %v846 = vpop.f32.mrb[0].mxu0
        %v847 = vadd.f32 %v798, %v846
        %v848 = vpop.f32.mrb[0].mxu0
        %849 = vmatprep.mubr.bf16.mxu0 %v306
        %850 = vmatmul.mubr.bf16.gmra.mrb[0].mxu0 %v305
        %v851 = vpop.f32.mrb[0].mxu0
        %v852 = vadd.f32 %v803, %v851
        %v853 = vpop.f32.mrb[0].mxu0
        %v854 = vpop.f32.mrb[0].mxu0
        %v855 = vadd.f32 %v806, %v854
        %v856 = vpop.f32.mrb[0].mxu0
        %857 = vdwg.mxu0
        %858 = vmatprep.subr.bf16.mxu0 0
        %859 = vmatpush1.bf16.msra.mxu0 %v654
        %860 = vmatprep.subr.bf16.mxu0 0
        %861 = vmatpush1.bf16.msra.mxu0 0
        %862 = vmatprep.subr.bf16.mxu0 0
        %863 = vmatpush1.bf16.msra.mxu0 0
        %864 = vmatprep.subr.bf16.mxu0 0
        %865 = vmatpush1.bf16.msra.mxu0 0
        %866 = vmatprep.subr.bf16.mxu0 0
        %867 = vmatpush1.bf16.msra.mxu0 0
        %868 = vmatprep.subr.bf16.mxu0 0
        %869 = vmatpush1.bf16.msra.mxu0 0
        %870 = vmatprep.subr.bf16.mxu0 0
        %871 = vmatpush1.bf16.msra.mxu0 0
        %872 = vmatprep.subr.bf16.mxu0 0
        %873 = vmatpush1.bf16.msra.mxu0 0
        %874 = vmatprep.subr.bf16.mxu0 0
        %875 = vmatpush1.bf16.msra.mxu0 0
        %876 = vmatprep.subr.bf16.mxu0 0
        %877 = vmatpush1.bf16.msra.mxu0 0
        %878 = vmatprep.subr.bf16.mxu0 0
        %879 = vmatpush1.bf16.msra.mxu0 0
        %880 = vmatprep.subr.bf16.mxu0 0
        %881 = vmatpush1.bf16.msra.mxu0 0
        %882 = vmatprep.subr.bf16.mxu0 0
        %883 = vmatpush1.bf16.msra.mxu0 0
        %884 = vmatprep.subr.bf16.mxu0 0
        %885 = vmatpush1.bf16.msra.mxu0 0
        %886 = vmatprep.subr.bf16.mxu0 0
        %887 = vmatpush1.bf16.msra.mxu0 0
        %888 = vmatprep.subr.bf16.mxu0 0
        %889 = vmatpush1.bf16.msra.mxu0 0
        %890 = vmatprep.mubr.bf16.mxu0 0
        %891 = vmatmul.mubr.bf16.gmra.mrb[0].mxu0 %v706
        %v892 = vpop.f32.mrb[0].mxu0
        %v893 = vadd.f32 %v844, %v892
        %v894 = vpop.f32.mrb[0].mxu0
        %v895 = vpop.f32.mrb[0].mxu0
        %v896 = vadd.f32 %v847, %v895
        %v897 = vpop.f32.mrb[0].mxu0
        %898 = vmatprep.mubr.bf16.mxu0 0
        %899 = vmatmul.mubr.bf16.gmra.mrb[0].mxu0 %v709
        %v900 = vpop.f32.mrb[0].mxu0
        %v901 = vadd.f32 %v852, %v900
        %v902 = vpop.f32.mrb[0].mxu0
        %v903 = vpop.f32.mrb[0].mxu0
        %v904 = vadd.f32 %v855, %v903
        %v905 = vpop.f32.mrb[0].mxu0
        %906 = vdwg.mxu0
        %v907 = vmax.f32 %v893, 0.0
        %v908 = vmax.f32 %v896, 0.0
        %v909 = vmax.f32 %v901, 0.0
        %v910 = vmax.f32 %v904, 0.0
        %v911 = vpack.c.bf16 %v908, %v907
        %v912 = vpack.c.bf16 %v910, %v909
        %v913 = vld [vmem:[#allocation7] sm:$0xf]
        %v914 = vld [vmem:[#allocation7 + $0x4] sm:$0xf]
        %v915 = vld [vmem:[#allocation7 + $0x8] sm:$0xf]
        %v916 = vld [vmem:[#allocation7 + $0xc] sm:$0xf]
        %v917 = vld [vmem:[#allocation7 + $0x10] sm:$0xf]
        %v918 = vld [vmem:[#allocation7 + $0x14] sm:$0xf]
        %v919 = vld [vmem:[#allocation7 + $0x18] sm:$0xf]
        %v920 = vld [vmem:[#allocation7 + $0x1c] sm:$0xf]
        %v921 = vld [vmem:[#allocation7 + $0x20] sm:$0xf]
        %v922 = vld [vmem:[#allocation7 + $0x24] sm:$0xf]
        %v923 = vld [vmem:[#allocation7 + $0x28] sm:$0xf]
        %v924 = vld [vmem:[#allocation7 + $0x2c] sm:$0xf]
        %v925 = vld [vmem:[#allocation7 + $0x30] sm:$0xf]
        %v926 = vld [vmem:[#allocation7 + $0x34] sm:$0xf]
        %v927 = vld [vmem:[#allocation7 + $0x38] sm:$0xf]
        %v928 = vld [vmem:[#allocation7 + $0x3c] sm:$0xf]
        %v929 = vlaneseq
        %v930 = vshrl.u32 %v929, 7
        %v931 = vsub.s32 1, %v930
        %v932 = vrot.slane %v265, %v931
        %v949 = vunpack.c.l.b16 %v913
        %v950 = vunpack.c.l.b16 %v914
        %v951 = vunpack.c.l.b16 %v915
        %v952 = vunpack.c.l.b16 %v916
        %v953 = vunpack.c.l.b16 %v917
        %v954 = vunpack.c.l.b16 %v918
        %v955 = vunpack.c.l.b16 %v919
        %v956 = vunpack.c.l.b16 %v920
        %v957 = vunpack.c.l.b16 %v921
        %v958 = vunpack.c.l.b16 %v922
        %v959 = vunpack.c.l.b16 %v923
        %v960 = vunpack.c.l.b16 %v924
        %v961 = vunpack.c.l.b16 %v925
        %v962 = vunpack.c.l.b16 %v926
        %v963 = vunpack.c.l.b16 %v927
        %v964 = vunpack.c.l.b16 %v928
        %v965 = vpack.c.b16 %v950, %v949
        %v966 = vpack.c.b16 %v952, %v951
        %v967 = vpack.c.b16 %v954, %v953
        %v968 = vpack.c.b16 %v956, %v955
        %v969 = vpack.c.b16 %v958, %v957
        %v970 = vpack.c.b16 %v960, %v959
        %v971 = vpack.c.b16 %v962, %v961
        %v972 = vpack.c.b16 %v964, %v963
        %981 = vmatprep.subr.bf16.mxu0 0
        %982 = vmatpush1.bf16.msra.mxu0 %v965
        %983 = vmatprep.subr.bf16.mxu0 0
        %984 = vmatpush1.bf16.msra.mxu0 %v966
        %985 = vmatprep.subr.bf16.mxu0 0
        %986 = vmatpush1.bf16.msra.mxu0 %v967
        %987 = vmatprep.subr.bf16.mxu0 0
        %988 = vmatpush1.bf16.msra.mxu0 %v968
        %989 = vmatprep.subr.bf16.mxu0 0
        %990 = vmatpush1.bf16.msra.mxu0 %v969
        %991 = vmatprep.subr.bf16.mxu0 0
        %992 = vmatpush1.bf16.msra.mxu0 %v970
        %993 = vmatprep.subr.bf16.mxu0 0
        %994 = vmatpush1.bf16.msra.mxu0 %v971
        %995 = vmatprep.subr.bf16.mxu0 0
        %996 = vmatpush1.bf16.msra.mxu0 %v972
        %997 = vmatprep.subr.bf16.mxu0 0
        %998 = vmatpush1.bf16.msra.mxu0 0
        %999 = vmatprep.subr.bf16.mxu0 0
        %1000 = vmatpush1.bf16.msra.mxu0 0
        %1001 = vmatprep.subr.bf16.mxu0 0
        %1002 = vmatpush1.bf16.msra.mxu0 0
        %1003 = vmatprep.subr.bf16.mxu0 0
        %1004 = vmatpush1.bf16.msra.mxu0 0
        %1005 = vmatprep.subr.bf16.mxu0 0
        %1006 = vmatpush1.bf16.msra.mxu0 0
        %1007 = vmatprep.subr.bf16.mxu0 0
        %1008 = vmatpush1.bf16.msra.mxu0 0
        %1009 = vmatprep.subr.bf16.mxu0 0
        %1010 = vmatpush1.bf16.msra.mxu0 0
        %1011 = vmatprep.subr.bf16.mxu0 0
        %1012 = vmatpush1.bf16.msra.mxu0 0
        %1013 = vmatprep.mubr.bf16.mxu0 0
        %1014 = vmatmul.mubr.bf16.gmra.mrb[0].mxu0 %v911
        %v1015 = vpop.f32.mrb[0].mxu0
        %v1016 = vadd.f32 %v932, %v1015
        %v1017 = vpop.f32.mrb[0].mxu0
        %v1018 = vpop.f32.mrb[0].mxu0
        %v1019 = vadd.f32 %v932, %v1018
        %v1020 = vpop.f32.mrb[0].mxu0
        %1021 = vmatprep.mubr.bf16.mxu0 0
        %1022 = vmatmul.mubr.bf16.gmra.mrb[0].mxu0 %v912
        %v1023 = vpop.f32.mrb[0].mxu0
        %v1024 = vadd.f32 %v932, %v1023
        %v1025 = vpop.f32.mrb[0].mxu0
        %v1026 = vpop.f32.mrb[0].mxu0
        %v1027 = vadd.f32 %v932, %v1026
        %v1028 = vpop.f32.mrb[0].mxu0
        %1029 = vdwg.mxu0
        %v1030 = vmax.f32 %v1016, 0.0
        %v1031 = vmax.f32 %v1019, 0.0
        %v1032 = vmax.f32 %v1024, 0.0
        %v1033 = vmax.f32 %v1027, 0.0
        %v1034 = vpack.c.bf16 %v1031, %v1030
        %v1035 = vpack.c.bf16 %v1033, %v1032
        %s1036 = scalar_lea.vmem [#allocation7], 64
        %v1037 = vld [vmem:[%s1036] sm:$0xf]
        %v1038 = vld [vmem:[%s1036 + $0x4] sm:$0xf]
        %v1039 = vld [vmem:[%s1036 + $0x8] sm:$0xf]
        %v1040 = vld [vmem:[%s1036 + $0xc] sm:$0xf]
        %v1041 = vld [vmem:[%s1036 + $0x10] sm:$0xf]
        %v1042 = vld [vmem:[%s1036 + $0x14] sm:$0xf]
        %v1043 = vld [vmem:[%s1036 + $0x18] sm:$0xf]
        %v1044 = vld [vmem:[%s1036 + $0x1c] sm:$0xf]
        %v1045 = vld [vmem:[%s1036 + $0x20] sm:$0xf]
        %v1046 = vld [vmem:[%s1036 + $0x24] sm:$0xf]
        %v1047 = vld [vmem:[%s1036 + $0x28] sm:$0xf]
        %v1048 = vld [vmem:[%s1036 + $0x2c] sm:$0xf]
        %v1049 = vld [vmem:[%s1036 + $0x30] sm:$0xf]
        %v1050 = vld [vmem:[%s1036 + $0x34] sm:$0xf]
        %v1051 = vld [vmem:[%s1036 + $0x38] sm:$0xf]
        %v1052 = vld [vmem:[%s1036 + $0x3c] sm:$0xf]
        %v1053 = vlaneseq
        %v1054 = vshrl.u32 %v1053, 7
        %v1055 = vsub.s32 2, %v1054
        %v1056 = vrot.slane %v265, %v1055
        %v1073 = vunpack.c.l.b16 %v1037
        %v1074 = vunpack.c.l.b16 %v1038
        %v1075 = vunpack.c.l.b16 %v1039
        %v1076 = vunpack.c.l.b16 %v1040
        %v1077 = vunpack.c.l.b16 %v1041
        %v1078 = vunpack.c.l.b16 %v1042
        %v1079 = vunpack.c.l.b16 %v1043
        %v1080 = vunpack.c.l.b16 %v1044
        %v1081 = vunpack.c.l.b16 %v1045
        %v1082 = vunpack.c.l.b16 %v1046
        %v1083 = vunpack.c.l.b16 %v1047
        %v1084 = vunpack.c.l.b16 %v1048
        %v1085 = vunpack.c.l.b16 %v1049
        %v1086 = vunpack.c.l.b16 %v1050
        %v1087 = vunpack.c.l.b16 %v1051
        %v1088 = vunpack.c.l.b16 %v1052
        %v1089 = vpack.c.b16 %v1074, %v1073
        %v1090 = vpack.c.b16 %v1076, %v1075
        %v1091 = vpack.c.b16 %v1078, %v1077
        %v1092 = vpack.c.b16 %v1080, %v1079
        %v1093 = vpack.c.b16 %v1082, %v1081
        %v1094 = vpack.c.b16 %v1084, %v1083
        %v1095 = vpack.c.b16 %v1086, %v1085
        %v1096 = vpack.c.b16 %v1088, %v1087
        %1105 = vmatprep.subr.bf16.mxu0 0
        %1106 = vmatpush1.bf16.msra.mxu0 %v1089
        %1107 = vmatprep.subr.bf16.mxu0 0
        %1108 = vmatpush1.bf16.msra.mxu0 %v1090
        %1109 = vmatprep.subr.bf16.mxu0 0
        %1110 = vmatpush1.bf16.msra.mxu0 %v1091
        %1111 = vmatprep.subr.bf16.mxu0 0
        %1112 = vmatpush1.bf16.msra.mxu0 %v1092
        %1113 = vmatprep.subr.bf16.mxu0 0
        %1114 = vmatpush1.bf16.msra.mxu0 %v1093
        %1115 = vmatprep.subr.bf16.mxu0 0
        %1116 = vmatpush1.bf16.msra.mxu0 %v1094
        %1117 = vmatprep.subr.bf16.mxu0 0
        %1118 = vmatpush1.bf16.msra.mxu0 %v1095
        %1119 = vmatprep.subr.bf16.mxu0 0
        %1120 = vmatpush1.bf16.msra.mxu0 %v1096
        %1121 = vmatprep.subr.bf16.mxu0 0
        %1122 = vmatpush1.bf16.msra.mxu0 0
        %1123 = vmatprep.subr.bf16.mxu0 0
        %1124 = vmatpush1.bf16.msra.mxu0 0
        %1125 = vmatprep.subr.bf16.mxu0 0
        %1126 = vmatpush1.bf16.msra.mxu0 0
        %1127 = vmatprep.subr.bf16.mxu0 0
        %1128 = vmatpush1.bf16.msra.mxu0 0
        %1129 = vmatprep.subr.bf16.mxu0 0
        %1130 = vmatpush1.bf16.msra.mxu0 0
        %1131 = vmatprep.subr.bf16.mxu0 0
        %1132 = vmatpush1.bf16.msra.mxu0 0
        %1133 = vmatprep.subr.bf16.mxu0 0
        %1134 = vmatpush1.bf16.msra.mxu0 0
        %1135 = vmatprep.subr.bf16.mxu0 0
        %1136 = vmatpush1.bf16.msra.mxu0 0
        %1137 = vmatprep.mubr.bf16.mxu0 0
        %1138 = vmatmul.mubr.bf16.gmra.mrb[0].mxu0 %v1034
        %v1139 = vpop.f32.mrb[0].mxu0
        %v1140 = vadd.f32 %v1056, %v1139
        %v1141 = vpop.f32.mrb[0].mxu0
        %v1142 = vpop.f32.mrb[0].mxu0
        %v1143 = vadd.f32 %v1056, %v1142
        %v1144 = vpop.f32.mrb[0].mxu0
        %1145 = vmatprep.mubr.bf16.mxu0 0
        %1146 = vmatmul.mubr.bf16.gmra.mrb[0].mxu0 %v1035
        %v1147 = vpop.f32.mrb[0].mxu0
        %v1148 = vadd.f32 %v1056, %v1147
        %v1149 = vpop.f32.mrb[0].mxu0
        %v1150 = vpop.f32.mrb[0].mxu0
        %v1151 = vadd.f32 %v1056, %v1150
        %v1152 = vpop.f32.mrb[0].mxu0
        %1153 = vdwg.mxu0
        %v1154 = vmax.f32 %v1140, 0.0
        %v1155 = vmax.f32 %v1143, 0.0
        %v1156 = vmax.f32 %v1148, 0.0
        %v1157 = vmax.f32 %v1151, 0.0
        %v1158 = vpack.c.bf16 %v1155, %v1154
        %v1159 = vpack.c.bf16 %v1157, %v1156
        %s1160 = scalar_lea.vmem [#allocation7], 128
        %v1161 = vld [vmem:[%s1160] sm:$0xf]
        %v1162 = vld [vmem:[%s1160 + $0x4] sm:$0xf]
        %v1163 = vld [vmem:[%s1160 + $0x8] sm:$0xf]
        %v1164 = vld [vmem:[%s1160 + $0xc] sm:$0xf]
        %v1165 = vld [vmem:[%s1160 + $0x10] sm:$0xf]
        %v1166 = vld [vmem:[%s1160 + $0x14] sm:$0xf]
        %v1167 = vld [vmem:[%s1160 + $0x18] sm:$0xf]
        %v1168 = vld [vmem:[%s1160 + $0x1c] sm:$0xf]
        %v1169 = vld [vmem:[%s1160 + $0x20] sm:$0xf]
        %v1170 = vld [vmem:[%s1160 + $0x24] sm:$0xf]
        %v1171 = vld [vmem:[%s1160 + $0x28] sm:$0xf]
        %v1172 = vld [vmem:[%s1160 + $0x2c] sm:$0xf]
        %v1173 = vld [vmem:[%s1160 + $0x30] sm:$0xf]
        %v1174 = vld [vmem:[%s1160 + $0x34] sm:$0xf]
        %v1175 = vld [vmem:[%s1160 + $0x38] sm:$0xf]
        %v1176 = vld [vmem:[%s1160 + $0x3c] sm:$0xf]
        %v1177 = vlaneseq
        %v1178 = vshrl.u32 %v1177, 7
        %v1179 = vsub.s32 3, %v1178
        %v1180 = vrot.slane %v265, %v1179
        %v1197 = vunpack.c.l.b16 %v1161
        %v1198 = vunpack.c.l.b16 %v1162
        %v1199 = vunpack.c.l.b16 %v1163
        %v1200 = vunpack.c.l.b16 %v1164
        %v1201 = vunpack.c.l.b16 %v1165
        %v1202 = vunpack.c.l.b16 %v1166
        %v1203 = vunpack.c.l.b16 %v1167
        %v1204 = vunpack.c.l.b16 %v1168
        %v1205 = vunpack.c.l.b16 %v1169
        %v1206 = vunpack.c.l.b16 %v1170
        %v1207 = vunpack.c.l.b16 %v1171
        %v1208 = vunpack.c.l.b16 %v1172
        %v1209 = vunpack.c.l.b16 %v1173
        %v1210 = vunpack.c.l.b16 %v1174
        %v1211 = vunpack.c.l.b16 %v1175
        %v1212 = vunpack.c.l.b16 %v1176
        %v1213 = vpack.c.b16 %v1198, %v1197
        %v1214 = vpack.c.b16 %v1200, %v1199
        %v1215 = vpack.c.b16 %v1202, %v1201
        %v1216 = vpack.c.b16 %v1204, %v1203
        %v1217 = vpack.c.b16 %v1206, %v1205
        %v1218 = vpack.c.b16 %v1208, %v1207
        %v1219 = vpack.c.b16 %v1210, %v1209
        %v1220 = vpack.c.b16 %v1212, %v1211
        %1229 = vmatprep.subr.bf16.mxu0 0
        %1230 = vmatpush1.bf16.msra.mxu0 %v1213
        %1231 = vmatprep.subr.bf16.mxu0 0
        %1232 = vmatpush1.bf16.msra.mxu0 %v1214
        %1233 = vmatprep.subr.bf16.mxu0 0
        %1234 = vmatpush1.bf16.msra.mxu0 %v1215
        %1235 = vmatprep.subr.bf16.mxu0 0
        %1236 = vmatpush1.bf16.msra.mxu0 %v1216
        %1237 = vmatprep.subr.bf16.mxu0 0
        %1238 = vmatpush1.bf16.msra.mxu0 %v1217
        %1239 = vmatprep.subr.bf16.mxu0 0
        %1240 = vmatpush1.bf16.msra.mxu0 %v1218
        %1241 = vmatprep.subr.bf16.mxu0 0
        %1242 = vmatpush1.bf16.msra.mxu0 %v1219
        %1243 = vmatprep.subr.bf16.mxu0 0
        %1244 = vmatpush1.bf16.msra.mxu0 %v1220
        %1245 = vmatprep.subr.bf16.mxu0 0
        %1246 = vmatpush1.bf16.msra.mxu0 0
        %1247 = vmatprep.subr.bf16.mxu0 0
        %1248 = vmatpush1.bf16.msra.mxu0 0
        %1249 = vmatprep.subr.bf16.mxu0 0
        %1250 = vmatpush1.bf16.msra.mxu0 0
        %1251 = vmatprep.subr.bf16.mxu0 0
        %1252 = vmatpush1.bf16.msra.mxu0 0
        %1253 = vmatprep.subr.bf16.mxu0 0
        %1254 = vmatpush1.bf16.msra.mxu0 0
        %1255 = vmatprep.subr.bf16.mxu0 0
        %1256 = vmatpush1.bf16.msra.mxu0 0
        %1257 = vmatprep.subr.bf16.mxu0 0
        %1258 = vmatpush1.bf16.msra.mxu0 0
        %1259 = vmatprep.subr.bf16.mxu0 0
        %1260 = vmatpush1.bf16.msra.mxu0 0
        %1261 = vmatprep.mubr.bf16.mxu0 0
        %1262 = vmatmul.mubr.bf16.gmra.mrb[0].mxu0 %v1158
        %v1263 = vpop.f32.mrb[0].mxu0
        %v1264 = vadd.f32 %v1180, %v1263
        %v1265 = vpop.f32.mrb[0].mxu0
        %v1266 = vpop.f32.mrb[0].mxu0
        %v1267 = vadd.f32 %v1180, %v1266
        %v1268 = vpop.f32.mrb[0].mxu0
        %1269 = vmatprep.mubr.bf16.mxu0 0
        %1270 = vmatmul.mubr.bf16.gmra.mrb[0].mxu0 %v1159
        %v1271 = vpop.f32.mrb[0].mxu0
        %v1272 = vadd.f32 %v1180, %v1271
        %v1273 = vpop.f32.mrb[0].mxu0
        %v1274 = vpop.f32.mrb[0].mxu0
        %v1275 = vadd.f32 %v1180, %v1274
        %v1276 = vpop.f32.mrb[0].mxu0
        %1277 = vdwg.mxu0
        %v1278 = vpack.c.bf16 %v1267, %v1264
        %v1279 = vpack.c.bf16 %v1275, %v1272
        %v1282 = vunpack.c.l.b16 %v1278
        %v1283 = vunpack.c.h.b16 %v1278
        %v1284 = vunpack.c.l.b16 %v1279
        %v1285 = vunpack.c.h.b16 %v1279
        %v1286 = vpack.c.b16 %v1282, %v1282
        %v1287 = vpack.c.b16 %v1283, %v1283
        %v1288 = vpack.c.b16 %v1284, %v1284
        %v1289 = vpack.c.b16 %v1285, %v1285
        %1294 = vst [vmem:[%s252] sm:$0xf] %v1286
        %1295 = vst [vmem:[%s252 + $0x4] sm:$0xf] %v1287
        %1296 = vst [vmem:[%s252 + $0x8] sm:$0xf] %v1288
        %1297 = vst [vmem:[%s252 + $0xc] sm:$0xf] %v1289
        %s1298 = sand.u32 %s119, 1
        %s1299 = scalar_lea.sflag [#allocation4], %s1298
        %s1300 = sand.u32 %s119, 1
        %s1301 = smul.addr %s1300, 16
        %s1302 = scalar_lea.vmem [#allocation8], %s1301
        // Predicated region
        $region49: #{tpu_custom_call.1} parent=35 // pred_check
          %p1303 = pneg %p129
        $region50: #{tpu_custom_call.1} parent=35 // pred_check_branch
          %1305 = sbr.rel (%p1303) target = $region52
        $region51: #{tpu_custom_call.1} parent=35 // pred_region
          %s1306 = smul.u32 4, %s22
          %s1307 = ssub.s32 7, %s1306
          %p1308 = scmp.lt.s32.totalorder %s1307, 4
          %s1309 = scalar_select %p1308, %s1307, 4
          %s1310 = smul.u32 64, %s1309
          %s1312 = ssub.s32 256, %s1310
          %1313 = vsyncadd %s1299, %s1312
          %p1314 = scmp.ne.s32.totalorder 0, %s1310
          %s1315 = smul.addr %s1306, 64
          %s1316 = scalar_lea.hbm %s4, %s1315
          %s1317 = smul.u32 4, %s1309
          %s1318 = sshll.u32 %s1302, 4
          %s1319 = int_to_ptr.vmem [resolvable:$true] %s1318
          %s1320 = sshll.u32 %s1317, 4
          %1324 = dma.vmem_to_hbm [thread:$0]  (%p1314), %s1319, %s1320, %s1316, %s1299, 64, 64, 4
        $region52: #{tpu_custom_call.1} parent=35 // pred_fallthru
          _
      $region36: #{tpu_custom_call.1} parent=5 // pred_fallthru
        _
      %p1325 = scmp.le.s32.totalorder 2, %s17
      // Predicated region
      $region53: #{tpu_custom_call.1} parent=5 // pred_check
        %p1326 = pneg %p1325
      $region54: #{tpu_custom_call.1} parent=5 // pred_check_branch
        %1328 = sbr.rel (%p1326) target = $region56
      $region55: #{tpu_custom_call.1} parent=5 // pred_region
        %s1329 = ssub.s32 %s17, 2
        // Predicated region
        $region57: #{tpu_custom_call.1} parent=55 // pred_check
          %p1330 = pneg %p135
        $region58: #{tpu_custom_call.1} parent=55 // pred_check_branch
          %1332 = sbr.rel (%p1330) target = $region60
        $region59: #{tpu_custom_call.1} parent=55 // pred_region
          %s1333 = sand.u32 %s120, 1
          %s1334 = scalar_lea.sflag [#allocation4], %s1333
          %s1335 = sand.u32 %s120, 1
          %s1336 = smul.addr %s1335, 16
          %s1337 = scalar_lea.vmem [#allocation8], %s1336
          %1338 = dma.done %s1334, 256
        $region60: #{tpu_custom_call.1} parent=55 // pred_fallthru
          _
      $region56: #{tpu_custom_call.1} parent=5 // pred_fallthru
        _
    $region6: #{tpu_custom_call.1} parent=1 // loop_footer
      %s21 = sadd.s32 1, %s17
    $region7: #{tpu_custom_call.1} parent=1 // loop_footer_branch
      %16 = sbr.rel target = $region3
    $region8: #{tpu_custom_call.1} parent=1 // loop_exit
      _
    %1339 = vsyncpa [#allocation3], 1
    %s1340 = scalar_lea.sflag [#allocation3], 1
    %1341 = vsyncpa %s1340, 1
    %1342 = vsyncpa [#allocation6], 1
    %1343 = vsyncpa [#allocation4], 1
    %s1344 = scalar_lea.sflag [#allocation4], 1
    %1345 = vsyncpa %s1344, 1

</llo_original>
